<compile_context>
chip_gen: v7x
topology: tpu7x:2x2x1
jax: 0.10.0
libtpu: 0.0.40
codegen_flags: <defaults>
</compile_context>

<pallas_src>
import functools
import math

import jax
import jax.numpy as jnp
from jax.experimental import pallas as pl
from jax.experimental.pallas import tpu as pltpu


def _round_up(a, b):
    return (a + b - 1) // b * b


# --------------------------------------------------------------------------- #
# projection kernel: h = x @ W, e1 = h . a1, e2 = h . a2
# --------------------------------------------------------------------------- #
def gat_project_kernel(x_ref, w_ref, a1_ref, a2_ref, h_ref, e1_ref, e2_ref):
    h = jnp.dot(x_ref[...], w_ref[...], preferred_element_type=jnp.float32)  # [TQ, Dp]
    e1_ref[...] = jnp.sum(h * a1_ref[...], axis=1, keepdims=True)            # [TQ, 1]
    e2_ref[...] = jnp.sum(h * a2_ref[...], axis=1, keepdims=True)            # [TQ, 1]
    h_ref[...] = h.astype(h_ref.dtype)                                       # bf16 for MXU


# --------------------------------------------------------------------------- #
# attention kernel: flash-style online softmax over KV tiles
# --------------------------------------------------------------------------- #
def gat_attn_kernel(e1_ref, e2_ref, adj_ref, h_ref, o_ref,
                    m_sc, l_sc, acc_sc, *, concat):
    ki = pl.program_id(1)

    @pl.when(ki == 0)
    def _():
        m_sc[...] = jnp.full_like(m_sc, -jnp.inf)
        l_sc[...] = jnp.zeros_like(l_sc)
        acc_sc[...] = jnp.zeros_like(acc_sc)

    # score tile: e[i, j] = LeakyReLU(e1_i + e2_j), additive -1e30 bias on non-edges
    s = e1_ref[...] + e2_ref[...]                                  # [TQ,1]+[1,TK] -> [TQ,TK]
    s = jnp.where(s > 0, s, 0.2 * s)                               # LeakyReLU(0.2)
    s = s + (adj_ref[...].astype(jnp.float32) - 1.0) * jnp.float32(1e30)

    # online softmax update (finite mask => m_new is always finite, no NaN)
    m_prev = m_sc[...]                                             # [TQ,1]
    m_new = jnp.maximum(m_prev, s.max(axis=1, keepdims=True))
    alpha = jnp.exp(m_prev - m_new)                                # rescale old partials
    p = jnp.exp(s - m_new)                                         # [TQ,TK] f32
    l_sc[...] = alpha * l_sc[...] + p.sum(axis=1, keepdims=True)
    acc_sc[...] = alpha * acc_sc[...] + jnp.dot(
        p.astype(jnp.bfloat16), h_ref[...], preferred_element_type=jnp.float32)
    m_sc[...] = m_new

    @pl.when(ki == pl.num_programs(1) - 1)
    def _():
        out = acc_sc[...] * pl.reciprocal(l_sc[...], approx=True)  # deferred normalization
        if concat:
            # ELU(alpha=1): x if x > 0 else exp(x) - 1
            out = jnp.where(out > 0, out, jnp.exp(jnp.minimum(out, 0.0)) - 1.0)
        o_ref[...] = out.astype(o_ref.dtype)


# --------------------------------------------------------------------------- #
# wrapper
# --------------------------------------------------------------------------- #
def gat_forward(x, W, a_weight, edge_index, concat=True, *, block_q=256, block_k=512):
    """x: [N, in_dim], W: [in_dim, out_dim] (transpose of torch W.weight),
    a_weight: [1, 2*out_dim] (torch a.weight), edge_index: (row, col) int arrays."""
    N, in_dim = x.shape
    out_dim = W.shape[1]
    Dp = _round_up(out_dim, 128)                      # lane-dense feature width

    n128 = _round_up(N, 128)
    tq = min(block_q, n128)
    tk = min(block_k, n128)
    Np = _round_up(N, math.lcm(tq, tk))               # both tiles divide padded N

    # pad node count and feature dims with zeros (padded rows are masked / sliced off)
    xp = jnp.zeros((Np, in_dim), jnp.float32).at[:N, :].set(x.astype(jnp.float32))
    Wp = jnp.zeros((in_dim, Dp), jnp.float32).at[:, :out_dim].set(W.astype(jnp.float32))
    a1 = jnp.zeros((1, Dp), jnp.float32).at[:, :out_dim].set(
        a_weight[:, :out_dim].astype(jnp.float32))
    a2 = jnp.zeros((1, Dp), jnp.float32).at[:, :out_dim].set(
        a_weight[:, out_dim:].astype(jnp.float32))

    # dense int8 adjacency mask from edge_index (glue, outside the kernel)
    row, col = edge_index
    adj = jnp.zeros((Np, Np), jnp.int8).at[row, col].set(1)

    # ---- 1) projection: h (bf16), e1, e2 -------------------------------------
    h, e1, e2col = pl.pallas_call(
        gat_project_kernel,
        out_shape=(
            jax.ShapeDtypeStruct((Np, Dp), jnp.bfloat16),
            jax.ShapeDtypeStruct((Np, 1), jnp.float32),
            jax.ShapeDtypeStruct((Np, 1), jnp.float32),
        ),
        grid_spec=pltpu.PrefetchScalarGridSpec(
            num_scalar_prefetch=0,
            grid=(Np // tq,),
            in_specs=[
                pl.BlockSpec((tq, in_dim), lambda i: (i, 0)),
                pl.BlockSpec((in_dim, Dp), lambda i: (0, 0)),
                pl.BlockSpec((1, Dp), lambda i: (0, 0)),
                pl.BlockSpec((1, Dp), lambda i: (0, 0)),
            ],
            out_specs=(
                pl.BlockSpec((tq, Dp), lambda i: (i, 0)),
                pl.BlockSpec((tq, 1), lambda i: (i, 0)),
                pl.BlockSpec((tq, 1), lambda i: (i, 0)),
            ),
        ),
        compiler_params=pltpu.CompilerParams(dimension_semantics=("parallel",)),
    )(xp, Wp, a1, a2)

    e2 = e2col.reshape(1, Np)                         # lane-oriented for the KV axis

    # ---- 2) tiled attention with online softmax ------------------------------
    kernel = functools.partial(gat_attn_kernel, concat=concat)
    outp = pl.pallas_call(
        kernel,
        out_shape=jax.ShapeDtypeStruct((Np, Dp), jnp.float32),
        grid_spec=pltpu.PrefetchScalarGridSpec(
            num_scalar_prefetch=0,
            grid=(Np // tq, Np // tk),
            in_specs=[
                pl.BlockSpec((tq, 1), lambda qi, ki: (qi, 0)),    # e1 (query rows)
                pl.BlockSpec((1, tk), lambda qi, ki: (0, ki)),    # e2 (kv cols)
                pl.BlockSpec((tq, tk), lambda qi, ki: (qi, ki)),  # adj tile (int8)
                pl.BlockSpec((tk, Dp), lambda qi, ki: (ki, 0)),   # h kv tile (bf16)
            ],
            out_specs=pl.BlockSpec((tq, Dp), lambda qi, ki: (qi, 0)),
            scratch_shapes=[
                pltpu.VMEM((tq, 1), jnp.float32),                 # running max
                pltpu.VMEM((tq, 1), jnp.float32),                 # running denom
                pltpu.VMEM((tq, Dp), jnp.float32),                # accumulator
            ],
        ),
        compiler_params=pltpu.CompilerParams(
            dimension_semantics=("parallel", "arbitrary"),
            vmem_limit_bytes=48 * 1024 * 1024,
        ),
    )(e1, e2, adj, h)

    return outp[:N, :out_dim]


# --------------------------------------------------------------------------- #
# helpers for the demo
# --------------------------------------------------------------------------- #
def xavier_uniform(key, shape, fan_in, fan_out, gain):
    bound = gain * (6.0 / (fan_in + fan_out)) ** 0.5
    return jax.random.uniform(key, shape, jnp.float32, -bound, bound)


def gat_reference(x, W, a_weight, edge_index, concat=True):
    """Pure-JAX reference reproducing the PyTorch forward."""
    N = x.shape[0]
    out_dim = W.shape[1]
    h = x @ W
    a1 = a_weight[0, :out_dim]
    a2 = a_weight[0, out_dim:]
    e = (h @ a1)[:, None] + (h @ a2)[None, :]
    e = jnp.where(e > 0, e, 0.2 * e)
    row, col = edge_index
    adj = jnp.zeros((N, N), bool).at[row, col].set(True)
    e = jnp.where(adj, e, -jnp.inf)
    att = jax.nn.softmax(e, axis=1)
    out = att @ h
    return jax.nn.elu(out) if concat else out


if __name__ == "__main__":
    key = jax.random.PRNGKey(0)
    N, in_dim, out_dim = 8, 16, 32
    kx, kw, ka = jax.random.split(key, 3)

    x = jax.random.normal(kx, (N, in_dim), jnp.float32)

    gain = 1.414
    # PyTorch W.weight is [out_dim, in_dim]; we store its transpose [in_dim, out_dim].
    W = xavier_uniform(kw, (in_dim, out_dim), fan_in=in_dim, fan_out=out_dim, gain=gain)
    # PyTorch a.weight is [1, 2*out_dim].
    a_weight = xavier_uniform(ka, (1, 2 * out_dim), fan_in=2 * out_dim, fan_out=1, gain=gain)

    # deterministic edge set: self-loops + a ring, so every softmax row is non-empty
    row = jnp.concatenate([jnp.arange(N), jnp.arange(N)])
    col = jnp.concatenate([jnp.arange(N), (jnp.arange(N) + 1) % N])
    edge_index = (row, col)

    out = gat_forward(x, W, a_weight, edge_index, concat=True)
    out = jax.block_until_ready(out)
    assert out.shape == (N, out_dim)

    ref = gat_reference(x, W, a_weight, edge_index, concat=True)
    assert jnp.allclose(out, ref, rtol=5e-2, atol=5e-2), "mismatch vs reference"

    print("KERNEL_OK")
</pallas_src>

<mosaic_0001>
module attributes {stable_mosaic.version = 11 : i64} {
  func.func @gat_project_kernel(%arg0: i32, %arg1: memref<128x16xf32, #tpu.memory_space<vmem>>, %arg2: memref<16x128xf32, #tpu.memory_space<vmem>>, %arg3: memref<1x128xf32, #tpu.memory_space<vmem>>, %arg4: memref<1x128xf32, #tpu.memory_space<vmem>>, %arg5: memref<128x128xbf16, #tpu.memory_space<vmem>>, %arg6: memref<128x1xf32, #tpu.memory_space<vmem>>, %arg7: memref<128x1xf32, #tpu.memory_space<vmem>>) attributes {dimension_semantics = [#tpu.dimension_semantics<parallel>], iteration_bounds = array<i64: 1>, scalar_prefetch = 0 : i64, scratch_operands = 0 : i64, tpu.core_type = #tpu.core_type<tc>, window_params = [{transform_indices = @transform_0, window_bounds = array<i64: 128, 16>}, {pipeline_mode = #tpu.pipeline_mode<synchronous>, transform_indices = @transform_1, window_bounds = array<i64: 16, 128>}, {pipeline_mode = #tpu.pipeline_mode<synchronous>, transform_indices = @transform_2, window_bounds = array<i64: 1, 128>}, {pipeline_mode = #tpu.pipeline_mode<synchronous>, transform_indices = @transform_3, window_bounds = array<i64: 1, 128>}, {transform_indices = @transform_4, window_bounds = array<i64: 128, 128>}, {transform_indices = @transform_5, window_bounds = array<i64: 128, 1>}, {transform_indices = @transform_6, window_bounds = array<i64: 128, 1>}]} {
    %c0 = arith.constant 0 : index
    %c0_0 = arith.constant 0 : index
    %0 = vector.load %arg1[%c0, %c0_0] : memref<128x16xf32, #tpu.memory_space<vmem>>, vector<128x16xf32>
    %c0_1 = arith.constant 0 : index
    %c0_2 = arith.constant 0 : index
    %1 = vector.load %arg2[%c0_1, %c0_2] : memref<16x128xf32, #tpu.memory_space<vmem>>, vector<16x128xf32>
    %cst = arith.constant dense<0.000000e+00> : vector<128x128xf32>
    %2 = tpu.matmul %0, %1, %cst {dimension_numbers = #tpu.dot_dimension_numbers<[1], [0], [0], [1], [0, 0, 1, 1], [], []>} : vector<128x16xf32>, vector<16x128xf32>, vector<128x128xf32> -> vector<128x128xf32>
    %c0_3 = arith.constant 0 : index
    %c0_4 = arith.constant 0 : index
    %3 = vector.load %arg3[%c0_3, %c0_4] : memref<1x128xf32, #tpu.memory_space<vmem>>, vector<1x128xf32>
    %4 = vector.broadcast %3 : vector<1x128xf32> to vector<128x128xf32>
    %5 = arith.mulf %2, %4 : vector<128x128xf32>
    %cst_5 = arith.constant dense<0.000000e+00> : vector<128xf32>
    %6 = vector.multi_reduction <add>, %5, %cst_5 [1] : vector<128x128xf32> to vector<128xf32>
    %7 = vector.shape_cast %6 : vector<128xf32> to vector<128x1xf32>
    %c0_6 = arith.constant 0 : index
    %c0_7 = arith.constant 0 : index
    %8 = vector.load %arg6[%c0_6, %c0_7] : memref<128x1xf32, #tpu.memory_space<vmem>>, vector<128x1xf32>
    tpu.vector_store %arg6[%c0_6, %c0_7], %7 {strides = array<i32>} : memref<128x1xf32, #tpu.memory_space<vmem>>, vector<128x1xf32>,
    %c0_8 = arith.constant 0 : index
    %c0_9 = arith.constant 0 : index
    %9 = vector.load %arg4[%c0_8, %c0_9] : memref<1x128xf32, #tpu.memory_space<vmem>>, vector<1x128xf32>
    %10 = vector.broadcast %9 : vector<1x128xf32> to vector<128x128xf32>
    %11 = arith.mulf %2, %10 : vector<128x128xf32>
    %cst_10 = arith.constant dense<0.000000e+00> : vector<128xf32>
    %12 = vector.multi_reduction <add>, %11, %cst_10 [1] : vector<128x128xf32> to vector<128xf32>
    %13 = vector.shape_cast %12 : vector<128xf32> to vector<128x1xf32>
    %c0_11 = arith.constant 0 : index
    %c0_12 = arith.constant 0 : index
    %14 = vector.load %arg7[%c0_11, %c0_12] : memref<128x1xf32, #tpu.memory_space<vmem>>, vector<128x1xf32>
    tpu.vector_store %arg7[%c0_11, %c0_12], %13 {strides = array<i32>} : memref<128x1xf32, #tpu.memory_space<vmem>>, vector<128x1xf32>,
    %15 = arith.truncf %2 : vector<128x128xf32> to vector<128x128xbf16>
    %c0_13 = arith.constant 0 : index
    %c0_14 = arith.constant 0 : index
    %16 = vector.load %arg5[%c0_13, %c0_14] : memref<128x128xbf16, #tpu.memory_space<vmem>>, vector<128x128xbf16>
    tpu.vector_store %arg5[%c0_13, %c0_14], %15 {strides = array<i32>} : memref<128x128xbf16, #tpu.memory_space<vmem>>, vector<128x128xbf16>,
    return
  }
  func.func @transform_0(%arg0: i32) -> (i32, i32) {
    %c0_i32 = arith.constant 0 : i32
    %c0_i32_0 = arith.constant 0 : i32
    return %arg0, %c0_i32 : i32, i32
  }
  func.func @transform_1(%arg0: i32) -> (i32, i32) {
    %c0_i32 = arith.constant 0 : i32
    %c0_i32_0 = arith.constant 0 : i32
    %c0_i32_1 = arith.constant 0 : i32
    return %c0_i32, %c0_i32_0 : i32, i32
  }
  func.func @transform_2(%arg0: i32) -> (i32, i32) {
    %c0_i32 = arith.constant 0 : i32
    %c0_i32_0 = arith.constant 0 : i32
    %c0_i32_1 = arith.constant 0 : i32
    return %c0_i32, %c0_i32_0 : i32, i32
  }
  func.func @transform_3(%arg0: i32) -> (i32, i32) {
    %c0_i32 = arith.constant 0 : i32
    %c0_i32_0 = arith.constant 0 : i32
    %c0_i32_1 = arith.constant 0 : i32
    return %c0_i32, %c0_i32_0 : i32, i32
  }
  func.func @transform_4(%arg0: i32) -> (i32, i32) {
    %c0_i32 = arith.constant 0 : i32
    %c0_i32_0 = arith.constant 0 : i32
    return %arg0, %c0_i32 : i32, i32
  }
  func.func @transform_5(%arg0: i32) -> (i32, i32) {
    %c0_i32 = arith.constant 0 : i32
    %c0_i32_0 = arith.constant 0 : i32
    return %arg0, %c0_i32 : i32, i32
  }
  func.func @transform_6(%arg0: i32) -> (i32, i32) {
    %c0_i32 = arith.constant 0 : i32
    %c0_i32_0 = arith.constant 0 : i32
    return %arg0, %c0_i32 : i32, i32
  }
}

</mosaic_0001>

<llo_original>
// kernel: tpu_custom_call.1
$region0: #{tpu_custom_call.1}
  #allocation0 [shape = 'u32[]', space=smem, size = 0x4, offset = 0x4, fixed_abs, tag = 'smem constant byte address 0x4 - core index']
  #allocation1 [shape = 'u32[144,128]{1,0:T(1,128)}', space=vmem, size = 0x12000, scoped, tag = 'internal scratch']
  %s0 = inlined_call_operand.vmem [shape: f32[128,16], index: 0, kind: input, shape index: {}]
  %s1 = inlined_call_operand.vmem [shape: f32[16,128], index: 1, kind: input, shape index: {}]
  %s2 = inlined_call_operand.vmem [shape: f32[1,128], index: 2, kind: input, shape index: {}]
  %s3 = inlined_call_operand.vmem [shape: f32[1,128], index: 3, kind: input, shape index: {}]
  %s4 = inlined_call_operand.hbm [shape: bf16[128,128], index: 4, kind: output, shape index: {0}]
  %s5 = inlined_call_operand.vmem [shape: f32[128,1], index: 5, kind: output, shape index: {1}]
  %s6 = inlined_call_operand.vmem [shape: f32[128,1], index: 6, kind: output, shape index: {2}]
  %7 = xla_tuple %s4, %s5, %s6
  %s8 = sld [smem:[#allocation0]]
  $region42: #{tpu_custom_call.1} parent=0
    _
  %s10 = ssub.s32 1, %s8
  %s11 = scalar_select 0, %s10, %s8
  $region1: #{tpu_custom_call.1} parent=0
    #allocation2 [shape = 'u8[32768]{0}', space=vmem, size = 0x8000, scoped, tag = 'output window, operand 0, single buffered']
    #allocation3 [shape = 's32[1]{0}', space=sflag, size = 0x4, scoped, tag = 'scoped memory for tpu_custom_call.1']
    %12 = vsyncpa [#allocation3], 0
    // Predicated region
    $region2: #{tpu_custom_call.1} parent=1 // pred_check
      _
    $region3: #{tpu_custom_call.1} parent=1 // pred_check_branch
      %14 = sbr.rel (0) target = $region5
    $region4: #{tpu_custom_call.1} parent=1 // pred_region
      _
    $region5: #{tpu_custom_call.1} parent=1 // pred_fallthru
      _
    // Predicated region
    $region6: #{tpu_custom_call.1} parent=1 // pred_check
      _
    $region7: #{tpu_custom_call.1} parent=1 // pred_check_branch
      %16 = sbr.rel (0) target = $region9
    $region8: #{tpu_custom_call.1} parent=1 // pred_region
      _
    $region9: #{tpu_custom_call.1} parent=1 // pred_fallthru
      _
    // Predicated region
    $region10: #{tpu_custom_call.1} parent=1 // pred_check
      _
    $region11: #{tpu_custom_call.1} parent=1 // pred_check_branch
      %18 = sbr.rel (0) target = $region13
    $region12: #{tpu_custom_call.1} parent=1 // pred_region
      _
    $region13: #{tpu_custom_call.1} parent=1 // pred_fallthru
      _
    // Predicated region
    $region14: #{tpu_custom_call.1} parent=1 // pred_check
      _
    $region15: #{tpu_custom_call.1} parent=1 // pred_check_branch
      %20 = sbr.rel (0) target = $region17
    $region16: #{tpu_custom_call.1} parent=1 // pred_region
      _
    $region17: #{tpu_custom_call.1} parent=1 // pred_fallthru
      _
    %v21 = vld [vmem:[%s0] sm:$0xff]
    %v22 = vld [vmem:[%s0 + $0x8] sm:$0xff]
    %v23 = vld [vmem:[%s0 + $0x10] sm:$0xff]
    %v24 = vld [vmem:[%s0 + $0x18] sm:$0xff]
    %v25 = vld [vmem:[%s0 + $0x20] sm:$0xff]
    %v26 = vld [vmem:[%s0 + $0x28] sm:$0xff]
    %v27 = vld [vmem:[%s0 + $0x30] sm:$0xff]
    %v28 = vld [vmem:[%s0 + $0x38] sm:$0xff]
    %v29 = vld [vmem:[%s0 + $0x40] sm:$0xff]
    %v30 = vld [vmem:[%s0 + $0x48] sm:$0xff]
    %v31 = vld [vmem:[%s0 + $0x50] sm:$0xff]
    %v32 = vld [vmem:[%s0 + $0x58] sm:$0xff]
    %v33 = vld [vmem:[%s0 + $0x60] sm:$0xff]
    %v34 = vld [vmem:[%s0 + $0x68] sm:$0xff]
    %v35 = vld [vmem:[%s0 + $0x70] sm:$0xff]
    %v36 = vld [vmem:[%s0 + $0x78] sm:$0xff]
    %v37 = vld [vmem:[%s1] sm:$0xff]
    %v38 = vld [vmem:[%s1 + $0x8] sm:$0xff]
    %vm39 = vcmask 130048
    %v41 = vsel %vm39, %v21, 0
    %v44 = vsel %vm39, %v22, 0
    %v47 = vsel %vm39, %v23, 0
    %v50 = vsel %vm39, %v24, 0
    %v53 = vsel %vm39, %v25, 0
    %v56 = vsel %vm39, %v26, 0
    %v59 = vsel %vm39, %v27, 0
    %v62 = vsel %vm39, %v28, 0
    %v65 = vsel %vm39, %v29, 0
    %v68 = vsel %vm39, %v30, 0
    %v71 = vsel %vm39, %v31, 0
    %v74 = vsel %vm39, %v32, 0
    %v77 = vsel %vm39, %v33, 0
    %v80 = vsel %vm39, %v34, 0
    %v83 = vsel %vm39, %v35, 0
    %v86 = vsel %vm39, %v36, 0
    %88 = vmatprep.subr.mxu0 0.0
    %89 = vmatpush1.msra.mxu0 %v37
    %90 = vmatprep.subr.mxu0 0.0
    %91 = vmatpush1.msra.mxu0 %v38
    %92 = vmatprep.subr.mxu0 0.0
    %93 = vmatpush1.msra.mxu0 0.0
    %94 = vmatprep.subr.mxu0 0.0
    %95 = vmatpush1.msra.mxu0 0.0
    %96 = vmatprep.subr.mxu0 0.0
    %97 = vmatpush1.msra.mxu0 0.0
    %98 = vmatprep.subr.mxu0 0.0
    %99 = vmatpush1.msra.mxu0 0.0
    %100 = vmatprep.subr.mxu0 0.0
    %101 = vmatpush1.msra.mxu0 0.0
    %102 = vmatprep.subr.mxu0 0.0
    %103 = vmatpush1.msra.mxu0 0.0
    %104 = vmatprep.subr.mxu0 0.0
    %105 = vmatpush1.msra.mxu0 0.0
    %106 = vmatprep.subr.mxu0 0.0
    %107 = vmatpush1.msra.mxu0 0.0
    %108 = vmatprep.subr.mxu0 0.0
    %109 = vmatpush1.msra.mxu0 0.0
    %110 = vmatprep.subr.mxu0 0.0
    %111 = vmatpush1.msra.mxu0 0.0
    %112 = vmatprep.subr.mxu0 0.0
    %113 = vmatpush1.msra.mxu0 0.0
    %114 = vmatprep.subr.mxu0 0.0
    %115 = vmatpush1.msra.mxu0 0.0
    %116 = vmatprep.subr.mxu0 0.0
    %117 = vmatpush1.msra.mxu0 0.0
    %118 = vmatprep.subr.mxu0 0.0
    %119 = vmatpush1.msra.mxu0 0.0
    %120 = vmatprep.subr.mxu0 0.0
    %121 = vmatpush1.msra.mxu0 0.0
    %122 = vmatprep.subr.mxu0 0.0
    %123 = vmatpush1.msra.mxu0 0.0
    %124 = vmatprep.subr.mxu0 0.0
    %125 = vmatpush1.msra.mxu0 0.0
    %126 = vmatprep.subr.mxu0 0.0
    %127 = vmatpush1.msra.mxu0 0.0
    %128 = vmatprep.subr.mxu0 0.0
    %129 = vmatpush1.msra.mxu0 0.0
    %130 = vmatprep.subr.mxu0 0.0
    %131 = vmatpush1.msra.mxu0 0.0
    %132 = vmatprep.subr.mxu0 0.0
    %133 = vmatpush1.msra.mxu0 0.0
    %134 = vmatprep.subr.mxu0 0.0
    %135 = vmatpush1.msra.mxu0 0.0
    %136 = vmatprep.subr.mxu0 0.0
    %137 = vmatpush1.msra.mxu0 0.0
    %138 = vmatprep.subr.mxu0 0.0
    %139 = vmatpush1.msra.mxu0 0.0
    %140 = vmatprep.subr.mxu0 0.0
    %141 = vmatpush1.msra.mxu0 0.0
    %142 = vmatprep.subr.mxu0 0.0
    %143 = vmatpush1.msra.mxu0 0.0
    %144 = vmatprep.subr.mxu0 0.0
    %145 = vmatpush1.msra.mxu0 0.0
    %146 = vmatprep.subr.mxu0 0.0
    %147 = vmatpush1.msra.mxu0 0.0
    %148 = vmatprep.subr.mxu0 0.0
    %149 = vmatpush1.msra.mxu0 0.0
    %150 = vmatprep.subr.mxu0 0.0
    %151 = vmatpush1.msra.mxu0 0.0
    %152 = vmatprep.mubr.f32.mxu0 0.0
    %153 = vmatmul.mubr.f32.gmra.mrb[0].mxu0 %v41
    %v154 = vpop.f32.mrb[0].mxu0
    %v155 = vadd.f32 0.0, %v154
    %v156 = vpop.f32.mrb[0].mxu0
    %157 = vmatprep.mubr.f32.mxu0 0.0
    %158 = vmatmul.mubr.f32.gmra.mrb[0].mxu0 %v44
    %v159 = vpop.f32.mrb[0].mxu0
    %v160 = vadd.f32 0.0, %v159
    %v161 = vpop.f32.mrb[0].mxu0
    %162 = vmatprep.mubr.f32.mxu0 0.0
    %163 = vmatmul.mubr.f32.gmra.mrb[0].mxu0 %v47
    %v164 = vpop.f32.mrb[0].mxu0
    %v165 = vadd.f32 0.0, %v164
    %v166 = vpop.f32.mrb[0].mxu0
    %167 = vmatprep.mubr.f32.mxu0 0.0
    %168 = vmatmul.mubr.f32.gmra.mrb[0].mxu0 %v50
    %v169 = vpop.f32.mrb[0].mxu0
    %v170 = vadd.f32 0.0, %v169
    %v171 = vpop.f32.mrb[0].mxu0
    %172 = vmatprep.mubr.f32.mxu0 0.0
    %173 = vmatmul.mubr.f32.gmra.mrb[0].mxu0 %v53
    %v174 = vpop.f32.mrb[0].mxu0
    %v175 = vadd.f32 0.0, %v174
    %v176 = vpop.f32.mrb[0].mxu0
    %177 = vmatprep.mubr.f32.mxu0 0.0
    %178 = vmatmul.mubr.f32.gmra.mrb[0].mxu0 %v56
    %v179 = vpop.f32.mrb[0].mxu0
    %v180 = vadd.f32 0.0, %v179
    %v181 = vpop.f32.mrb[0].mxu0
    %182 = vmatprep.mubr.f32.mxu0 0.0
    %183 = vmatmul.mubr.f32.gmra.mrb[0].mxu0 %v59
    %v184 = vpop.f32.mrb[0].mxu0
    %v185 = vadd.f32 0.0, %v184
    %v186 = vpop.f32.mrb[0].mxu0
    %187 = vmatprep.mubr.f32.mxu0 0.0
    %188 = vmatmul.mubr.f32.gmra.mrb[0].mxu0 %v62
    %v189 = vpop.f32.mrb[0].mxu0
    %v190 = vadd.f32 0.0, %v189
    %v191 = vpop.f32.mrb[0].mxu0
    %192 = vmatprep.mubr.f32.mxu0 0.0
    %193 = vmatmul.mubr.f32.gmra.mrb[0].mxu0 %v65
    %v194 = vpop.f32.mrb[0].mxu0
    %v195 = vadd.f32 0.0, %v194
    %v196 = vpop.f32.mrb[0].mxu0
    %197 = vmatprep.mubr.f32.mxu0 0.0
    %198 = vmatmul.mubr.f32.gmra.mrb[0].mxu0 %v68
    %v199 = vpop.f32.mrb[0].mxu0
    %v200 = vadd.f32 0.0, %v199
    %v201 = vpop.f32.mrb[0].mxu0
    %202 = vmatprep.mubr.f32.mxu0 0.0
    %203 = vmatmul.mubr.f32.gmra.mrb[0].mxu0 %v71
    %v204 = vpop.f32.mrb[0].mxu0
    %v205 = vadd.f32 0.0, %v204
    %v206 = vpop.f32.mrb[0].mxu0
    %207 = vmatprep.mubr.f32.mxu0 0.0
    %208 = vmatmul.mubr.f32.gmra.mrb[0].mxu0 %v74
    %v209 = vpop.f32.mrb[0].mxu0
    %v210 = vadd.f32 0.0, %v209
    %v211 = vpop.f32.mrb[0].mxu0
    %212 = vmatprep.mubr.f32.mxu0 0.0
    %213 = vmatmul.mubr.f32.gmra.mrb[0].mxu0 %v77
    %v214 = vpop.f32.mrb[0].mxu0
    %v215 = vadd.f32 0.0, %v214
    %v216 = vpop.f32.mrb[0].mxu0
    %217 = vmatprep.mubr.f32.mxu0 0.0
    %218 = vmatmul.mubr.f32.gmra.mrb[0].mxu0 %v80
    %v219 = vpop.f32.mrb[0].mxu0
    %v220 = vadd.f32 0.0, %v219
    %v221 = vpop.f32.mrb[0].mxu0
    %222 = vmatprep.mubr.f32.mxu0 0.0
    %223 = vmatmul.mubr.f32.gmra.mrb[0].mxu0 %v83
    %v224 = vpop.f32.mrb[0].mxu0
    %v225 = vadd.f32 0.0, %v224
    %v226 = vpop.f32.mrb[0].mxu0
    %227 = vmatprep.mubr.f32.mxu0 0.0
    %228 = vmatmul.mubr.f32.gmra.mrb[0].mxu0 %v86
    %v229 = vpop.f32.mrb[0].mxu0
    %v230 = vadd.f32 0.0, %v229
    %v231 = vpop.f32.mrb[0].mxu0
    %232 = vdwg.mxu0
    %v233 = vld [vmem:[%s2] sm:$0x1]
    %v235 = vlaneseq
    %v236 = vshrl.u32 %v235, 7
    %v237 = vsub.s32 0, %v236
    %v238 = vrot.slane %v233, %v237
    %v240 = vmul.f32 %v155, %v238
    %v241 = vmul.f32 %v160, %v238
    %v242 = vmul.f32 %v165, %v238
    %v243 = vmul.f32 %v170, %v238
    %v244 = vmul.f32 %v175, %v238
    %v245 = vmul.f32 %v180, %v238
    %v246 = vmul.f32 %v185, %v238
    %v247 = vmul.f32 %v190, %v238
    %v248 = vmul.f32 %v195, %v238
    %v249 = vmul.f32 %v200, %v238
    %v250 = vmul.f32 %v205, %v238
    %v251 = vmul.f32 %v210, %v238
    %v252 = vmul.f32 %v215, %v238
    %v253 = vmul.f32 %v220, %v238
    %v254 = vmul.f32 %v225, %v238
    %v255 = vmul.f32 %v230, %v238
    %256 = vadd.xlane.f32.xlu0 %v240
    %v257 = vpop.xlane.xlu0 %256
    %258 = vadd.xlane.f32.xlu0 %v241
    %v259 = vpop.xlane.xlu0 %258
    %260 = vadd.xlane.f32.xlu0 %v242
    %v261 = vpop.xlane.xlu0 %260
    %262 = vadd.xlane.f32.xlu0 %v243
    %v263 = vpop.xlane.xlu0 %262
    %264 = vadd.xlane.f32.xlu0 %v244
    %v265 = vpop.xlane.xlu0 %264
    %266 = vadd.xlane.f32.xlu0 %v245
    %v267 = vpop.xlane.xlu0 %266
    %268 = vadd.xlane.f32.xlu0 %v246
    %v269 = vpop.xlane.xlu0 %268
    %270 = vadd.xlane.f32.xlu0 %v247
    %v271 = vpop.xlane.xlu0 %270
    %272 = vadd.xlane.f32.xlu0 %v248
    %v273 = vpop.xlane.xlu0 %272
    %274 = vadd.xlane.f32.xlu0 %v249
    %v275 = vpop.xlane.xlu0 %274
    %276 = vadd.xlane.f32.xlu0 %v250
    %v277 = vpop.xlane.xlu0 %276
    %278 = vadd.xlane.f32.xlu0 %v251
    %v279 = vpop.xlane.xlu0 %278
    %280 = vadd.xlane.f32.xlu0 %v252
    %v281 = vpop.xlane.xlu0 %280
    %282 = vadd.xlane.f32.xlu0 %v253
    %v283 = vpop.xlane.xlu0 %282
    %284 = vadd.xlane.f32.xlu0 %v254
    %v285 = vpop.xlane.xlu0 %284
    %286 = vadd.xlane.f32.xlu0 %v255
    %v287 = vpop.xlane.xlu0 %286
    %vm288 = vcmask 7168
    %289 = vst.msk [vmem:[%s5] sm:$0xff] %vm288, %v257
    %290 = vst.msk [vmem:[%s5 + $0x8] sm:$0xff] %vm288, %v259
    %291 = vst.msk [vmem:[%s5 + $0x10] sm:$0xff] %vm288, %v261
    %292 = vst.msk [vmem:[%s5 + $0x18] sm:$0xff] %vm288, %v263
    %293 = vst.msk [vmem:[%s5 + $0x20] sm:$0xff] %vm288, %v265
    %294 = vst.msk [vmem:[%s5 + $0x28] sm:$0xff] %vm288, %v267
    %295 = vst.msk [vmem:[%s5 + $0x30] sm:$0xff] %vm288, %v269
    %296 = vst.msk [vmem:[%s5 + $0x38] sm:$0xff] %vm288, %v271
    %297 = vst.msk [vmem:[%s5 + $0x40] sm:$0xff] %vm288, %v273
    %298 = vst.msk [vmem:[%s5 + $0x48] sm:$0xff] %vm288, %v275
    %299 = vst.msk [vmem:[%s5 + $0x50] sm:$0xff] %vm288, %v277
    %300 = vst.msk [vmem:[%s5 + $0x58] sm:$0xff] %vm288, %v279
    %301 = vst.msk [vmem:[%s5 + $0x60] sm:$0xff] %vm288, %v281
    %302 = vst.msk [vmem:[%s5 + $0x68] sm:$0xff] %vm288, %v283
    %303 = vst.msk [vmem:[%s5 + $0x70] sm:$0xff] %vm288, %v285
    %304 = vst.msk [vmem:[%s5 + $0x78] sm:$0xff] %vm288, %v287
    %v305 = vld [vmem:[%s3] sm:$0x1]
    %v307 = vlaneseq
    %v308 = vshrl.u32 %v307, 7
    %v309 = vsub.s32 0, %v308
    %v310 = vrot.slane %v305, %v309
    %v312 = vmul.f32 %v155, %v310
    %v313 = vmul.f32 %v160, %v310
    %v314 = vmul.f32 %v165, %v310
    %v315 = vmul.f32 %v170, %v310
    %v316 = vmul.f32 %v175, %v310
    %v317 = vmul.f32 %v180, %v310
    %v318 = vmul.f32 %v185, %v310
    %v319 = vmul.f32 %v190, %v310
    %v320 = vmul.f32 %v195, %v310
    %v321 = vmul.f32 %v200, %v310
    %v322 = vmul.f32 %v205, %v310
    %v323 = vmul.f32 %v210, %v310
    %v324 = vmul.f32 %v215, %v310
    %v325 = vmul.f32 %v220, %v310
    %v326 = vmul.f32 %v225, %v310
    %v327 = vmul.f32 %v230, %v310
    %328 = vadd.xlane.f32.xlu0 %v312
    %v329 = vpop.xlane.xlu0 %328
    %330 = vadd.xlane.f32.xlu0 %v313
    %v331 = vpop.xlane.xlu0 %330
    %332 = vadd.xlane.f32.xlu0 %v314
    %v333 = vpop.xlane.xlu0 %332
    %334 = vadd.xlane.f32.xlu0 %v315
    %v335 = vpop.xlane.xlu0 %334
    %336 = vadd.xlane.f32.xlu0 %v316
    %v337 = vpop.xlane.xlu0 %336
    %338 = vadd.xlane.f32.xlu0 %v317
    %v339 = vpop.xlane.xlu0 %338
    %340 = vadd.xlane.f32.xlu0 %v318
    %v341 = vpop.xlane.xlu0 %340
    %342 = vadd.xlane.f32.xlu0 %v319
    %v343 = vpop.xlane.xlu0 %342
    %344 = vadd.xlane.f32.xlu0 %v320
    %v345 = vpop.xlane.xlu0 %344
    %346 = vadd.xlane.f32.xlu0 %v321
    %v347 = vpop.xlane.xlu0 %346
    %348 = vadd.xlane.f32.xlu0 %v322
    %v349 = vpop.xlane.xlu0 %348
    %350 = vadd.xlane.f32.xlu0 %v323
    %v351 = vpop.xlane.xlu0 %350
    %352 = vadd.xlane.f32.xlu0 %v324
    %v353 = vpop.xlane.xlu0 %352
    %354 = vadd.xlane.f32.xlu0 %v325
    %v355 = vpop.xlane.xlu0 %354
    %356 = vadd.xlane.f32.xlu0 %v326
    %v357 = vpop.xlane.xlu0 %356
    %358 = vadd.xlane.f32.xlu0 %v327
    %v359 = vpop.xlane.xlu0 %358
    %360 = vst.msk [vmem:[%s6] sm:$0xff] %vm288, %v329
    %361 = vst.msk [vmem:[%s6 + $0x8] sm:$0xff] %vm288, %v331
    %362 = vst.msk [vmem:[%s6 + $0x10] sm:$0xff] %vm288, %v333
    %363 = vst.msk [vmem:[%s6 + $0x18] sm:$0xff] %vm288, %v335
    %364 = vst.msk [vmem:[%s6 + $0x20] sm:$0xff] %vm288, %v337
    %365 = vst.msk [vmem:[%s6 + $0x28] sm:$0xff] %vm288, %v339
    %366 = vst.msk [vmem:[%s6 + $0x30] sm:$0xff] %vm288, %v341
    %367 = vst.msk [vmem:[%s6 + $0x38] sm:$0xff] %vm288, %v343
    %368 = vst.msk [vmem:[%s6 + $0x40] sm:$0xff] %vm288, %v345
    %369 = vst.msk [vmem:[%s6 + $0x48] sm:$0xff] %vm288, %v347
    %370 = vst.msk [vmem:[%s6 + $0x50] sm:$0xff] %vm288, %v349
    %371 = vst.msk [vmem:[%s6 + $0x58] sm:$0xff] %vm288, %v351
    %372 = vst.msk [vmem:[%s6 + $0x60] sm:$0xff] %vm288, %v353
    %373 = vst.msk [vmem:[%s6 + $0x68] sm:$0xff] %vm288, %v355
    %374 = vst.msk [vmem:[%s6 + $0x70] sm:$0xff] %vm288, %v357
    %375 = vst.msk [vmem:[%s6 + $0x78] sm:$0xff] %vm288, %v359
    %v376 = vpack.c.bf16 %v160, %v155
    %v377 = vpack.c.bf16 %v170, %v165
    %v378 = vpack.c.bf16 %v180, %v175
    %v379 = vpack.c.bf16 %v190, %v185
    %v380 = vpack.c.bf16 %v200, %v195
    %v381 = vpack.c.bf16 %v210, %v205
    %v382 = vpack.c.bf16 %v220, %v215
    %v383 = vpack.c.bf16 %v230, %v225
    %v392 = vunpack.c.l.b16 %v376
    %v393 = vunpack.c.h.b16 %v376
    %v394 = vunpack.c.l.b16 %v377
    %v395 = vunpack.c.h.b16 %v377
    %v396 = vunpack.c.l.b16 %v378
    %v397 = vunpack.c.h.b16 %v378
    %v398 = vunpack.c.l.b16 %v379
    %v399 = vunpack.c.h.b16 %v379
    %v400 = vunpack.c.l.b16 %v380
    %v401 = vunpack.c.h.b16 %v380
    %v402 = vunpack.c.l.b16 %v381
    %v403 = vunpack.c.h.b16 %v381
    %v404 = vunpack.c.l.b16 %v382
    %v405 = vunpack.c.h.b16 %v382
    %v406 = vunpack.c.l.b16 %v383
    %v407 = vunpack.c.h.b16 %v383
    %v408 = vpack.c.b16 %v392, %v392
    %v409 = vpack.c.b16 %v393, %v393
    %v410 = vpack.c.b16 %v394, %v394
    %v411 = vpack.c.b16 %v395, %v395
    %v412 = vpack.c.b16 %v396, %v396
    %v413 = vpack.c.b16 %v397, %v397
    %v414 = vpack.c.b16 %v398, %v398
    %v415 = vpack.c.b16 %v399, %v399
    %v416 = vpack.c.b16 %v400, %v400
    %v417 = vpack.c.b16 %v401, %v401
    %v418 = vpack.c.b16 %v402, %v402
    %v419 = vpack.c.b16 %v403, %v403
    %v420 = vpack.c.b16 %v404, %v404
    %v421 = vpack.c.b16 %v405, %v405
    %v422 = vpack.c.b16 %v406, %v406
    %v423 = vpack.c.b16 %v407, %v407
    %440 = vst [vmem:[#allocation2] sm:$0xf] %v408
    %441 = vst [vmem:[#allocation2 + $0x4] sm:$0xf] %v409
    %442 = vst [vmem:[#allocation2 + $0x8] sm:$0xf] %v410
    %443 = vst [vmem:[#allocation2 + $0xc] sm:$0xf] %v411
    %444 = vst [vmem:[#allocation2 + $0x10] sm:$0xf] %v412
    %445 = vst [vmem:[#allocation2 + $0x14] sm:$0xf] %v413
    %446 = vst [vmem:[#allocation2 + $0x18] sm:$0xf] %v414
    %447 = vst [vmem:[#allocation2 + $0x1c] sm:$0xf] %v415
    %448 = vst [vmem:[#allocation2 + $0x20] sm:$0xf] %v416
    %449 = vst [vmem:[#allocation2 + $0x24] sm:$0xf] %v417
    %450 = vst [vmem:[#allocation2 + $0x28] sm:$0xf] %v418
    %451 = vst [vmem:[#allocation2 + $0x2c] sm:$0xf] %v419
    %452 = vst [vmem:[#allocation2 + $0x30] sm:$0xf] %v420
    %453 = vst [vmem:[#allocation2 + $0x34] sm:$0xf] %v421
    %454 = vst [vmem:[#allocation2 + $0x38] sm:$0xf] %v422
    %455 = vst [vmem:[#allocation2 + $0x3c] sm:$0xf] %v423
    // Predicated region
    $region18: #{tpu_custom_call.1} parent=1 // pred_check
      _
    $region19: #{tpu_custom_call.1} parent=1 // pred_check_branch
      %457 = sbr.rel (0) target = $region21
    $region20: #{tpu_custom_call.1} parent=1 // pred_region
      %s459 = ssub.s32 1024, 1024
      %460 = vsyncadd [#allocation3], %s459
      %s461 = sshll.u32 [#allocation2], 4
      %s462 = int_to_ptr.vmem [resolvable:$true] %s461
      %467 = dma.vmem_to_hbm [thread:$0]  %s462, 1024, %s4, [#allocation3], 64, 64, 4
    $region21: #{tpu_custom_call.1} parent=1 // pred_fallthru
      _
    // Predicated region
    $region22: #{tpu_custom_call.1} parent=1 // pred_check
      _
    $region23: #{tpu_custom_call.1} parent=1 // pred_check_branch
      %469 = sbr.rel (0) target = $region25
    $region24: #{tpu_custom_call.1} parent=1 // pred_region
      _
    $region25: #{tpu_custom_call.1} parent=1 // pred_fallthru
      _
    // Predicated region
    $region26: #{tpu_custom_call.1} parent=1 // pred_check
      _
    $region27: #{tpu_custom_call.1} parent=1 // pred_check_branch
      %471 = sbr.rel (0) target = $region29
    $region28: #{tpu_custom_call.1} parent=1 // pred_region
      _
    $region29: #{tpu_custom_call.1} parent=1 // pred_fallthru
      _
    // Predicated region
    $region30: #{tpu_custom_call.1} parent=1 // pred_check
      _
    $region31: #{tpu_custom_call.1} parent=1 // pred_check_branch
      %473 = sbr.rel (0) target = $region33
    $region32: #{tpu_custom_call.1} parent=1 // pred_region
      %474 = dma.done [#allocation3], 1024
    $region33: #{tpu_custom_call.1} parent=1 // pred_fallthru
      _
    // Predicated region
    $region34: #{tpu_custom_call.1} parent=1 // pred_check
      _
    $region35: #{tpu_custom_call.1} parent=1 // pred_check_branch
      %476 = sbr.rel (0) target = $region37
    $region36: #{tpu_custom_call.1} parent=1 // pred_region
      _
    $region37: #{tpu_custom_call.1} parent=1 // pred_fallthru
      _
    // Predicated region
    $region38: #{tpu_custom_call.1} parent=1 // pred_check
      _
    $region39: #{tpu_custom_call.1} parent=1 // pred_check_branch
      %478 = sbr.rel (0) target = $region41
    $region40: #{tpu_custom_call.1} parent=1 // pred_region
      _
    $region41: #{tpu_custom_call.1} parent=1 // pred_fallthru
      _
    %479 = vsyncpa [#allocation3], 1

</llo_original>
